<compile_context>
chip_gen: v7x
topology: tpu7x:2x2x1
jax: 0.10.0
libtpu: 0.0.40
codegen_flags: <defaults>
</compile_context>

<pallas_src>
import functools
import math

import jax
import jax.numpy as jnp
from jax.experimental import pallas as pl
from jax.experimental.pallas import tpu as pltpu


_SQRT_2_OVER_PI = math.sqrt(2.0 / math.pi)
_INV_SQRT_2 = 1.0 / math.sqrt(2.0)


# ----------------------------------------------------------------------------- helpers
def _round_up(n, m):
    return (n + m - 1) // m * m


def _pad2d(a, rows, cols):
    if a.shape == (rows, cols):
        return a
    return jnp.pad(a, ((0, rows - a.shape[0]), (0, cols - a.shape[1])))


def _gelu(x, approx):
    if approx:
        # tanh approximation: transcendental goes to the EUP slot; math stays in x.dtype
        # (bf16 on v6e/v7x when vector_dtype=bfloat16).
        return 0.5 * x * (1.0 + jnp.tanh(_SQRT_2_OVER_PI * (x + 0.044715 * x * x * x)))
    # PyTorch nn.GELU() default: exact erf. Computed in f32 (erf is a VPU polynomial).
    xf = x.astype(jnp.float32)
    return (0.5 * xf * (1.0 + jax.lax.erf(xf * _INV_SQRT_2))).astype(x.dtype)


# ----------------------------------------------------------------------------- kernel
def _encoder_kernel(x_ref, w1_ref, aff1_ref, w2_ref, aff2_ref, w3_ref, b3_ref,
                    o_ref, *, approx_gelu, vector_dtype):
    w_dtype = w1_ref.dtype
    vdt = vector_dtype

    x = x_ref[...]
    if x.dtype != w_dtype:
        x = x.astype(w_dtype)

    aff1 = aff1_ref[...].astype(vdt)       # rows: [b1; bn1_scale; bn1_shift]
    aff2 = aff2_ref[...].astype(vdt)       # rows: [b2; bn2_scale; bn2_shift]
    b3 = b3_ref[...].astype(vdt)

    # ---- Block 0: Linear -> GELU -> (dropout: identity in eval) -> BN(eval) ----
    h = jnp.dot(x, w1_ref[...], preferred_element_type=jnp.float32).astype(vdt)
    h = _gelu(h + aff1[0:1, :], approx_gelu)
    h0 = h * aff1[1:2, :] + aff1[2:3, :]

    # ---- Block 1 with residual: h0 + Block(h0) ----
    h = jnp.dot(h0.astype(w_dtype), w2_ref[...],
                preferred_element_type=jnp.float32).astype(vdt)
    h = _gelu(h + aff2[0:1, :], approx_gelu)
    h1 = h0 + (h * aff2[1:2, :] + aff2[2:3, :])

    # ---- Final layer: Linear -> GELU ----
    out = jnp.dot(h1.astype(w_dtype), w3_ref[...],
                  preferred_element_type=jnp.float32).astype(vdt)
    o_ref[...] = _gelu(out + b3, approx_gelu).astype(o_ref.dtype)


# --------------------------------------------------------------- single-buffering probe
@functools.lru_cache(maxsize=None)
def _supports_single_buffering():
    """One-time capability probe for pipeline_mode=pl.Buffered(1) (no broad try/except
    around the real kernel)."""
    if not hasattr(pl, "Buffered"):
        return False
    try:
        def k(a_ref, c_ref, o_ref):
            o_ref[...] = a_ref[...] + c_ref[...]
        f = pl.pallas_call(
            k,
            out_shape=jax.ShapeDtypeStruct((16, 128), jnp.float32),
            grid_spec=pltpu.PrefetchScalarGridSpec(
                num_scalar_prefetch=0,
                grid=(2,),
                in_specs=[
                    pl.BlockSpec((8, 128), lambda i: (i, 0)),
                    pl.BlockSpec((8, 128), lambda i: (0, 0),
                                 pipeline_mode=pl.Buffered(1)),
                ],
                out_specs=pl.BlockSpec((8, 128), lambda i: (i, 0)),
            ),
        )
        jax.block_until_ready(f(jnp.zeros((16, 128), jnp.float32),
                                jnp.zeros((8, 128), jnp.float32)))
        return True
    except Exception:   # older jax / Mosaic without single-buffering support
        return False


# ----------------------------------------------------------------------------- builder
def _build_call(kernel, B_p, bm, d_in_p, d_hid_p, d_out_p, out_dtype,
                single_buffer, vmem_limit):
    if single_buffer:
        # Constant index_map -> one resident buffer; default double-buffering would
        # waste a full extra weight copy of VMEM per grid step.
        const = lambda shape: pl.BlockSpec(shape, lambda i: (0, 0),
                                           pipeline_mode=pl.Buffered(1))
    else:
        const = lambda shape: pl.BlockSpec(shape, lambda i: (0, 0))

    return pl.pallas_call(
        kernel,
        out_shape=jax.ShapeDtypeStruct((B_p, d_out_p), out_dtype),
        grid_spec=pltpu.PrefetchScalarGridSpec(
            num_scalar_prefetch=0,
            grid=(B_p // bm,),
            in_specs=[
                pl.BlockSpec((bm, d_in_p), lambda i: (i, 0)),   # x tile
                const((d_in_p, d_hid_p)),                       # W1
                const((3, d_hid_p)),                            # [b1; bn1_scale; bn1_shift]
                const((d_hid_p, d_hid_p)),                      # W2
                const((3, d_hid_p)),                            # [b2; bn2_scale; bn2_shift]
                const((d_hid_p, d_out_p)),                      # W3
                const((1, d_out_p)),                            # b3
            ],
            out_specs=pl.BlockSpec((bm, d_out_p), lambda i: (i, 0)),
        ),
        compiler_params=pltpu.CompilerParams(
            dimension_semantics=("parallel",),
            vmem_limit_bytes=int(vmem_limit),
        ),
    )


@functools.partial(
    jax.jit,
    static_argnames=("bm", "n_tiles", "d_out", "approx_gelu", "vector_dtype",
                     "out_dtype", "single_buffer", "vmem_limit"))
def _forward_impl(x, w1, aff1, w2, aff2, w3, b3, *, bm, n_tiles, d_out, approx_gelu,
                  vector_dtype, out_dtype, single_buffer, vmem_limit):
    B, d_in = x.shape
    d_in_p, d_hid_p = w1.shape
    d_out_p = w3.shape[1]
    B_p = n_tiles * bm
    w_dtype = w1.dtype

    # Feed activations in the weight dtype (halves x HBM traffic on the bf16 path).
    xp = x.astype(w_dtype)
    if (B_p, d_in_p) != (B, d_in):
        xp = jnp.pad(xp, ((0, B_p - B), (0, d_in_p - d_in)))

    kernel = functools.partial(_encoder_kernel, approx_gelu=approx_gelu,
                               vector_dtype=vector_dtype)
    out = _build_call(kernel, B_p, bm, d_in_p, d_hid_p, d_out_p, out_dtype,
                      single_buffer, vmem_limit)(xp, w1, aff1, w2, aff2, w3, b3)
    return out[:B, :d_out]


# ----------------------------------------------------------------------------- API
def prepare_params(params, weight_dtype=jnp.float32):
    """Pad/pack parameters ONCE (call at init, not per forward).

    weight_dtype: bfloat16 is recommended on all of v5e/v6e/v7x (bf16 is the MXU rate;
    accumulation inside the kernel is always f32). Biases / folded-BN slabs stay f32.
    """
    d_in, d_hid = params["w1"].shape
    d_out = params["w3"].shape[1]
    d_in_p, d_hid_p, d_out_p = (_round_up(d, 128) for d in (d_in, d_hid, d_out))
    f32 = lambda a: a.astype(jnp.float32)
    wpad = lambda a, r, c: _pad2d(a.astype(weight_dtype), r, c)
    slab = lambda b, s, t: _pad2d(
        jnp.concatenate([f32(b), f32(s), f32(t)], axis=0), 3, d_hid_p)
    return dict(
        w1=wpad(params["w1"], d_in_p, d_hid_p),
        w2=wpad(params["w2"], d_hid_p, d_hid_p),
        w3=wpad(params["w3"], d_hid_p, d_out_p),
        aff1=slab(params["b1"], params["bn1_scale"], params["bn1_shift"]),
        aff2=slab(params["b2"], params["bn2_scale"], params["bn2_shift"]),
        b3=_pad2d(f32(params["b3"]), 1, d_out_p),
        d_in=d_in, d_out=d_out,
    )


def e_encoder_forward(x, prepared, *, bm=512, approx_gelu=False,
                      vector_dtype=None, out_dtype=None):
    """Fused E_Encoder forward (eval-mode semantics).

    x:        (B, input_dim) array.
    prepared: dict from prepare_params() (weights may be bf16; f32 accumulation).
    bm:       target batch tile. 512 recommended on v6e/v7x, 128-256 on v5e; the actual
              tile is shrunk to minimize padding (ragged batches pad <8 rows per tile).
    approx_gelu:  True -> tanh GELU (routes the transcendental through the EUP slot;
              ~1e-3 deviation from PyTorch's exact-erf nn.GELU()).
    vector_dtype: dtype for the elementwise bias/GELU/BN/residual math. Default f32
              (exact). Pass jnp.bfloat16 on v6e/v7x to halve VALU work; keep f32 on v5e.
    out_dtype: output dtype (default x.dtype). Pass bf16 if downstream tolerates it to
              halve output HBM traffic.
    """
    B, d_in = x.shape
    assert d_in == prepared["d_in"], "input feature dim mismatch with prepared params"
    d_out = prepared["d_out"]
    w1, w2, w3 = prepared["w1"], prepared["w2"], prepared["w3"]
    aff1, aff2, b3 = prepared["aff1"], prepared["aff2"], prepared["b3"]
    d_in_p, d_hid_p = w1.shape
    d_out_p = w3.shape[1]
    w_dtype = w1.dtype

    out_dtype = jax.dtypes.canonicalize_dtype(out_dtype if out_dtype is not None
                                              else x.dtype)
    vector_dtype = jax.dtypes.canonicalize_dtype(vector_dtype if vector_dtype is not None
                                                 else jnp.float32)

    # Batch tiling: minimal padding; force >=2 tiles on larger batches so both v7x
    # TensorCores get work under dimension_semantics=("parallel",).
    n_tiles = max(1, -(-B // bm))
    if n_tiles == 1 and B >= 256:
        n_tiles = 2
    bm_eff = max(8, _round_up(-(-B // n_tiles), 8))

    # Explicit VMEM budget: weights resident once + double-buffered activation tiles
    # + f32 intermediates + margin; floor 16 MiB, cap 56 MiB (headroom under v7x 64 MiB).
    wbytes = w1.dtype.itemsize
    est = (
        (d_in_p * d_hid_p + d_hid_p * d_hid_p + d_hid_p * d_out_p) * wbytes
        + (6 * d_hid_p + d_out_p) * 4
        + 2 * bm_eff * d_in_p * wbytes           # x tile (weight dtype), double-buffered
        + 2 * bm_eff * d_out_p * out_dtype.itemsize
        + 4 * bm_eff * d_hid_p * 4               # h / h0 / h1 intermediates (headroom)
        + (4 << 20)
    )
    vmem_limit = int(min(max(est, 16 << 20), 56 << 20))

    return _forward_impl(
        x, w1, aff1, w2, aff2, w3, b3,
        bm=bm_eff, n_tiles=n_tiles, d_out=d_out, approx_gelu=bool(approx_gelu),
        vector_dtype=vector_dtype, out_dtype=out_dtype,
        single_buffer=_supports_single_buffering(), vmem_limit=vmem_limit)


# ----------------------------------------------------------------------------- init/ref
def init_params(key, input_dim, hidden_dim, output_dim):
    """Deterministic init mimicking nn.Linear default (uniform +-1/sqrt(fan_in))
    and BatchNorm1d default (gamma=1, beta=0, running_mean=0, running_var=1)."""
    ks = jax.random.split(key, 6)
    eps = 1e-5

    def linear(kw, kb, fan_in, fan_out):
        bound = 1.0 / math.sqrt(fan_in)
        w = jax.random.uniform(kw, (fan_in, fan_out), jnp.float32, -bound, bound)
        b = jax.random.uniform(kb, (1, fan_out), jnp.float32, -bound, bound)
        return w, b

    w1, b1 = linear(ks[0], ks[1], input_dim, hidden_dim)
    w2, b2 = linear(ks[2], ks[3], hidden_dim, hidden_dim)
    w3, b3 = linear(ks[4], ks[5], hidden_dim, output_dim)

    # Fold BN (eval): y = x*gamma/sqrt(var+eps) + (beta - mean*gamma/sqrt(var+eps))
    gamma = jnp.ones((1, hidden_dim), jnp.float32)
    beta = jnp.zeros((1, hidden_dim), jnp.float32)
    rmean = jnp.zeros((1, hidden_dim), jnp.float32)
    rvar = jnp.ones((1, hidden_dim), jnp.float32)
    scale = gamma / jnp.sqrt(rvar + eps)
    shift = beta - rmean * scale

    return dict(
        w1=w1, b1=b1, bn1_scale=scale, bn1_shift=shift,
        w2=w2, b2=b2, bn2_scale=scale, bn2_shift=shift,
        w3=w3, b3=b3,
    )


def _reference_forward(x, p):
    gelu = lambda v: 0.5 * v * (1.0 + jax.lax.erf(v / math.sqrt(2.0)))
    h0 = gelu(x @ p["w1"] + p["b1"]) * p["bn1_scale"] + p["bn1_shift"]
    h1 = h0 + (gelu(h0 @ p["w2"] + p["b2"]) * p["bn2_scale"] + p["bn2_shift"])
    return gelu(h1 @ p["w3"] + p["b3"])


if __name__ == "__main__":
    # Small shapes consistent with the module (real config: 374 -> 768 -> 768 -> 768).
    # Deliberately unaligned to exercise the padding paths (B=20, features 24/64/32).
    B, INPUT_DIM, HIDDEN_DIM, OUTPUT_DIM = 20, 24, 64, 32

    key = jax.random.PRNGKey(0)
    kx, kp = jax.random.split(key)
    x = jax.random.normal(kx, (B, INPUT_DIM), jnp.float32)
    params = init_params(kp, INPUT_DIM, HIDDEN_DIM, OUTPUT_DIM)
    ref = _reference_forward(x, params)

    # f32 weights, exact-erf GELU (PyTorch-default semantics); bm=16 -> 2 grid tiles,
    # ragged batch padded to 32 and sliced back.
    prep_f32 = prepare_params(params, jnp.float32)
    out = jax.block_until_ready(e_encoder_forward(x, prep_f32, bm=16))
    assert out.shape == (B, OUTPUT_DIM)
    assert jnp.allclose(out, ref, atol=1e-5, rtol=1e-5)

    # bf16 fast path (v6e/v7x): bf16 weights + bf16 activations in + bf16 vector math
    # + tanh GELU on the EUP slot. f32 MXU accumulation preserved (looser tolerance).
    prep_bf16 = prepare_params(params, jnp.bfloat16)
    out_bf16 = jax.block_until_ready(
        e_encoder_forward(x, prep_bf16, bm=16, approx_gelu=True,
                          vector_dtype=jnp.bfloat16))
    assert out_bf16.shape == (B, OUTPUT_DIM)
    assert jnp.allclose(out_bf16, ref, atol=1e-1, rtol=1e-1)

    print("KERNEL_OK")
</pallas_src>

<mosaic_0001>
module attributes {stable_mosaic.version = 11 : i64} {
  func.func @k(%arg0: i32, %arg1: memref<8x128xf32, #tpu.memory_space<vmem>>, %arg2: memref<8x128xf32, #tpu.memory_space<vmem>>, %arg3: memref<8x128xf32, #tpu.memory_space<vmem>>) attributes {dimension_semantics = [#tpu.dimension_semantics<arbitrary>], iteration_bounds = array<i64: 2>, scalar_prefetch = 0 : i64, scratch_operands = 0 : i64, tpu.core_type = #tpu.core_type<tc>, window_params = [{transform_indices = @transform_0, window_bounds = array<i64: 8, 128>}, {pipeline_mode = #tpu.pipeline_mode<synchronous>, transform_indices = @transform_1, window_bounds = array<i64: 8, 128>}, {transform_indices = @transform_2, window_bounds = array<i64: 8, 128>}]} {
    %c0 = arith.constant 0 : index
    %c0_0 = arith.constant 0 : index
    %0 = vector.load %arg1[%c0, %c0_0] : memref<8x128xf32, #tpu.memory_space<vmem>>, vector<8x128xf32>
    %c0_1 = arith.constant 0 : index
    %c0_2 = arith.constant 0 : index
    %1 = vector.load %arg2[%c0_1, %c0_2] : memref<8x128xf32, #tpu.memory_space<vmem>>, vector<8x128xf32>
    %2 = arith.addf %0, %1 : vector<8x128xf32>
    %c0_3 = arith.constant 0 : index
    %c0_4 = arith.constant 0 : index
    %3 = vector.load %arg3[%c0_3, %c0_4] : memref<8x128xf32, #tpu.memory_space<vmem>>, vector<8x128xf32>
    tpu.vector_store %arg3[%c0_3, %c0_4], %2 {strides = array<i32>} : memref<8x128xf32, #tpu.memory_space<vmem>>, vector<8x128xf32>,
    return
  }
  func.func @transform_0(%arg0: i32) -> (i32, i32) {
    %c0_i32 = arith.constant 0 : i32
    %c0_i32_0 = arith.constant 0 : i32
    return %arg0, %c0_i32 : i32, i32
  }
  func.func @transform_1(%arg0: i32) -> (i32, i32) {
    %c0_i32 = arith.constant 0 : i32
    %c0_i32_0 = arith.constant 0 : i32
    %c0_i32_1 = arith.constant 0 : i32
    return %c0_i32, %c0_i32_0 : i32, i32
  }
  func.func @transform_2(%arg0: i32) -> (i32, i32) {
    %c0_i32 = arith.constant 0 : i32
    %c0_i32_0 = arith.constant 0 : i32
    return %arg0, %c0_i32 : i32, i32
  }
}

module attributes {stable_mosaic.version = 11 : i64} {
  func.func @_encoder_kernel(%arg0: i32, %arg1: memref<16x128xf32, #tpu.memory_space<vmem>>, %arg2: memref<128x128xf32, #tpu.memory_space<vmem>>, %arg3: memref<3x128xf32, #tpu.memory_space<vmem>>, %arg4: memref<128x128xf32, #tpu.memory_space<vmem>>, %arg5: memref<3x128xf32, #tpu.memory_space<vmem>>, %arg6: memref<128x128xf32, #tpu.memory_space<vmem>>, %arg7: memref<1x128xf32, #tpu.memory_space<vmem>>, %arg8: memref<16x128xf32, #tpu.memory_space<vmem>>) attributes {dimension_semantics = [#tpu.dimension_semantics<parallel>], iteration_bounds = array<i64: 2>, scalar_prefetch = 0 : i64, scratch_operands = 0 : i64, tpu.core_type = #tpu.core_type<tc>, window_params = [{transform_indices = @transform_0, window_bounds = array<i64: 16, 128>}, {pipeline_mode = #tpu.pipeline_mode<synchronous>, transform_indices = @transform_1, window_bounds = array<i64: 128, 128>}, {pipeline_mode = #tpu.pipeline_mode<synchronous>, transform_indices = @transform_2, window_bounds = array<i64: 3, 128>}, {pipeline_mode = #tpu.pipeline_mode<synchronous>, transform_indices = @transform_3, window_bounds = array<i64: 128, 128>}, {pipeline_mode = #tpu.pipeline_mode<synchronous>, transform_indices = @transform_4, window_bounds = array<i64: 3, 128>}, {pipeline_mode = #tpu.pipeline_mode<synchronous>, transform_indices = @transform_5, window_bounds = array<i64: 128, 128>}, {pipeline_mode = #tpu.pipeline_mode<synchronous>, transform_indices = @transform_6, window_bounds = array<i64: 1, 128>}, {transform_indices = @transform_7, window_bounds = array<i64: 16, 128>}]} {
    %c0 = arith.constant 0 : index
    %c0_0 = arith.constant 0 : index
    %0 = vector.load %arg1[%c0, %c0_0] : memref<16x128xf32, #tpu.memory_space<vmem>>, vector<16x128xf32>
    %c0_1 = arith.constant 0 : index
    %c0_2 = arith.constant 0 : index
    %1 = vector.load %arg3[%c0_1, %c0_2] : memref<3x128xf32, #tpu.memory_space<vmem>>, vector<3x128xf32>
    %c0_3 = arith.constant 0 : index
    %c0_4 = arith.constant 0 : index
    %2 = vector.load %arg5[%c0_3, %c0_4] : memref<3x128xf32, #tpu.memory_space<vmem>>, vector<3x128xf32>
    %c0_5 = arith.constant 0 : index
    %c0_6 = arith.constant 0 : index
    %3 = vector.load %arg7[%c0_5, %c0_6] : memref<1x128xf32, #tpu.memory_space<vmem>>, vector<1x128xf32>
    %c0_7 = arith.constant 0 : index
    %c0_8 = arith.constant 0 : index
    %4 = vector.load %arg2[%c0_7, %c0_8] : memref<128x128xf32, #tpu.memory_space<vmem>>, vector<128x128xf32>
    %cst = arith.constant dense<0.000000e+00> : vector<16x128xf32>
    %5 = tpu.matmul %0, %4, %cst {dimension_numbers = #tpu.dot_dimension_numbers<[1], [0], [0], [1], [0, 0, 1, 1], [], []>} : vector<16x128xf32>, vector<128x128xf32>, vector<16x128xf32> -> vector<16x128xf32>
    %6 = vector.extract_strided_slice %1 {offsets = [0, 0], sizes = [1, 128], strides = [1, 1]} : vector<3x128xf32> to vector<1x128xf32>
    %7 = vector.broadcast %6 : vector<1x128xf32> to vector<16x128xf32>
    %8 = arith.addf %5, %7 : vector<16x128xf32>
    %cst_9 = arith.constant 5.000000e-01 : f32
    %9 = vector.broadcast %cst_9 : f32 to vector<16x128xf32>
    %10 = arith.mulf %9, %8 : vector<16x128xf32>
    %cst_10 = arith.constant 0.707106769 : f32
    %11 = vector.broadcast %cst_10 : f32 to vector<16x128xf32>
    %12 = arith.mulf %8, %11 : vector<16x128xf32>
    %13 = math.erf %12 : vector<16x128xf32>
    %cst_11 = arith.constant 1.000000e+00 : f32
    %14 = vector.broadcast %cst_11 : f32 to vector<16x128xf32>
    %15 = arith.addf %14, %13 : vector<16x128xf32>
    %16 = arith.mulf %10, %15 : vector<16x128xf32>
    %17 = vector.extract_strided_slice %1 {offsets = [1, 0], sizes = [1, 128], strides = [1, 1]} : vector<3x128xf32> to vector<1x128xf32>
    %18 = vector.broadcast %17 : vector<1x128xf32> to vector<16x128xf32>
    %19 = arith.mulf %16, %18 : vector<16x128xf32>
    %20 = vector.extract_strided_slice %1 {offsets = [2, 0], sizes = [1, 128], strides = [1, 1]} : vector<3x128xf32> to vector<1x128xf32>
    %21 = vector.broadcast %20 : vector<1x128xf32> to vector<16x128xf32>
    %22 = arith.addf %19, %21 : vector<16x128xf32>
    %c0_12 = arith.constant 0 : index
    %c0_13 = arith.constant 0 : index
    %23 = vector.load %arg4[%c0_12, %c0_13] : memref<128x128xf32, #tpu.memory_space<vmem>>, vector<128x128xf32>
    %cst_14 = arith.constant dense<0.000000e+00> : vector<16x128xf32>
    %24 = tpu.matmul %22, %23, %cst_14 {dimension_numbers = #tpu.dot_dimension_numbers<[1], [0], [0], [1], [0, 0, 1, 1], [], []>} : vector<16x128xf32>, vector<128x128xf32>, vector<16x128xf32> -> vector<16x128xf32>
    %25 = vector.extract_strided_slice %2 {offsets = [0, 0], sizes = [1, 128], strides = [1, 1]} : vector<3x128xf32> to vector<1x128xf32>
    %26 = vector.broadcast %25 : vector<1x128xf32> to vector<16x128xf32>
    %27 = arith.addf %24, %26 : vector<16x128xf32>
    %cst_15 = arith.constant 5.000000e-01 : f32
    %28 = vector.broadcast %cst_15 : f32 to vector<16x128xf32>
    %29 = arith.mulf %28, %27 : vector<16x128xf32>
    %cst_16 = arith.constant 0.707106769 : f32
    %30 = vector.broadcast %cst_16 : f32 to vector<16x128xf32>
    %31 = arith.mulf %27, %30 : vector<16x128xf32>
    %32 = math.erf %31 : vector<16x128xf32>
    %cst_17 = arith.constant 1.000000e+00 : f32
    %33 = vector.broadcast %cst_17 : f32 to vector<16x128xf32>
    %34 = arith.addf %33, %32 : vector<16x128xf32>
    %35 = arith.mulf %29, %34 : vector<16x128xf32>
    %36 = vector.extract_strided_slice %2 {offsets = [1, 0], sizes = [1, 128], strides = [1, 1]} : vector<3x128xf32> to vector<1x128xf32>
    %37 = vector.broadcast %36 : vector<1x128xf32> to vector<16x128xf32>
    %38 = arith.mulf %35, %37 : vector<16x128xf32>
    %39 = vector.extract_strided_slice %2 {offsets = [2, 0], sizes = [1, 128], strides = [1, 1]} : vector<3x128xf32> to vector<1x128xf32>
    %40 = vector.broadcast %39 : vector<1x128xf32> to vector<16x128xf32>
    %41 = arith.addf %38, %40 : vector<16x128xf32>
    %42 = arith.addf %22, %41 : vector<16x128xf32>
    %c0_18 = arith.constant 0 : index
    %c0_19 = arith.constant 0 : index
    %43 = vector.load %arg6[%c0_18, %c0_19] : memref<128x128xf32, #tpu.memory_space<vmem>>, vector<128x128xf32>
    %cst_20 = arith.constant dense<0.000000e+00> : vector<16x128xf32>
    %44 = tpu.matmul %42, %43, %cst_20 {dimension_numbers = #tpu.dot_dimension_numbers<[1], [0], [0], [1], [0, 0, 1, 1], [], []>} : vector<16x128xf32>, vector<128x128xf32>, vector<16x128xf32> -> vector<16x128xf32>
    %45 = vector.broadcast %3 : vector<1x128xf32> to vector<16x128xf32>
    %46 = arith.addf %44, %45 : vector<16x128xf32>
    %cst_21 = arith.constant 5.000000e-01 : f32
    %47 = vector.broadcast %cst_21 : f32 to vector<16x128xf32>
    %48 = arith.mulf %47, %46 : vector<16x128xf32>
    %cst_22 = arith.constant 0.707106769 : f32
    %49 = vector.broadcast %cst_22 : f32 to vector<16x128xf32>
    %50 = arith.mulf %46, %49 : vector<16x128xf32>
    %51 = math.erf %50 : vector<16x128xf32>
    %cst_23 = arith.constant 1.000000e+00 : f32
    %52 = vector.broadcast %cst_23 : f32 to vector<16x128xf32>
    %53 = arith.addf %52, %51 : vector<16x128xf32>
    %54 = arith.mulf %48, %53 : vector<16x128xf32>
    %c0_24 = arith.constant 0 : index
    %c0_25 = arith.constant 0 : index
    %55 = vector.load %arg8[%c0_24, %c0_25] : memref<16x128xf32, #tpu.memory_space<vmem>>, vector<16x128xf32>
    tpu.vector_store %arg8[%c0_24, %c0_25], %54 {strides = array<i32>} : memref<16x128xf32, #tpu.memory_space<vmem>>, vector<16x128xf32>,
    return
  }
  func.func @transform_0(%arg0: i32) -> (i32, i32) {
    %c0_i32 = arith.constant 0 : i32
    %c0_i32_0 = arith.constant 0 : i32
    return %arg0, %c0_i32 : i32, i32
  }
  func.func @transform_1(%arg0: i32) -> (i32, i32) {
    %c0_i32 = arith.constant 0 : i32
    %c0_i32_0 = arith.constant 0 : i32
    %c0_i32_1 = arith.constant 0 : i32
    return %c0_i32, %c0_i32_0 : i32, i32
  }
  func.func @transform_2(%arg0: i32) -> (i32, i32) {
    %c0_i32 = arith.constant 0 : i32
    %c0_i32_0 = arith.constant 0 : i32
    %c0_i32_1 = arith.constant 0 : i32
    return %c0_i32, %c0_i32_0 : i32, i32
  }
  func.func @transform_3(%arg0: i32) -> (i32, i32) {
    %c0_i32 = arith.constant 0 : i32
    %c0_i32_0 = arith.constant 0 : i32
    %c0_i32_1 = arith.constant 0 : i32
    return %c0_i32, %c0_i32_0 : i32, i32
  }
  func.func @transform_4(%arg0: i32) -> (i32, i32) {
    %c0_i32 = arith.constant 0 : i32
    %c0_i32_0 = arith.constant 0 : i32
    %c0_i32_1 = arith.constant 0 : i32
    return %c0_i32, %c0_i32_0 : i32, i32
  }
  func.func @transform_5(%arg0: i32) -> (i32, i32) {
    %c0_i32 = arith.constant 0 : i32
    %c0_i32_0 = arith.constant 0 : i32
    %c0_i32_1 = arith.constant 0 : i32
    return %c0_i32, %c0_i32_0 : i32, i32
  }
  func.func @transform_6(%arg0: i32) -> (i32, i32) {
    %c0_i32 = arith.constant 0 : i32
    %c0_i32_0 = arith.constant 0 : i32
    %c0_i32_1 = arith.constant 0 : i32
    return %c0_i32, %c0_i32_0 : i32, i32
  }
  func.func @transform_7(%arg0: i32) -> (i32, i32) {
    %c0_i32 = arith.constant 0 : i32
    %c0_i32_0 = arith.constant 0 : i32
    return %arg0, %c0_i32 : i32, i32
  }
}

</mosaic_0001>

<llo_original>
// kernel: tpu_custom_call.1
$region0: #{tpu_custom_call.1}
  #allocation0 [shape = 'u32[]', space=smem, size = 0x4, offset = 0x4, fixed_abs, tag = 'smem constant byte address 0x4 - core index']
  #allocation1 [shape = 'u32[144,128]{1,0:T(1,128)}', space=vmem, size = 0x12000, scoped, tag = 'internal scratch']
  %s0 = inlined_call_operand.hbm [shape: f32[16,128], index: 0, kind: input, shape index: {}]
  %s1 = inlined_call_operand.hbm [shape: f32[8,128], index: 1, kind: input, shape index: {}]
  %s2 = inlined_call_operand.hbm [shape: f32[16,128], index: 2, kind: output, shape index: {}]
  %s3 = sld [smem:[#allocation0]]
  $region49: #{tpu_custom_call.1} parent=0
    _
  %s5 = ssub.s32 1, %s3
  %s6 = scalar_select 0, %s5, %s3
  $region1: #{tpu_custom_call.1} parent=0
    #allocation2 [shape = 'u8[8192]{0}', space=vmem, size = 0x2000, scoped, tag = 'input window, operand 0']
    #allocation3 [shape = 's32[2]{0}', space=sflag, size = 0x8, scoped, tag = 'scoped memory for tpu_custom_call.1']
    #allocation4 [shape = 's32[2]{0}', space=sflag, size = 0x8, scoped, tag = 'scoped memory for tpu_custom_call.1']
    #allocation5 [shape = 'u8[4096]{0}', space=vmem, size = 0x1000, scoped, tag = 'input window, operand 1, single buffered']
    #allocation6 [shape = 's32[1]{0}', space=sflag, size = 0x4, scoped, tag = 'scoped memory for tpu_custom_call.1']
    #allocation7 [shape = 'u8[8192]{0}', space=vmem, size = 0x2000, scoped, tag = 'output window, operand 0']
    %7 = vsyncpa [#allocation3], 0
    %s8 = scalar_lea.sflag [#allocation3], 1
    %9 = vsyncpa %s8, 0
    %10 = vsyncpa [#allocation6], 0
    %11 = vsyncpa [#allocation4], 0
    %s12 = scalar_lea.sflag [#allocation4], 1
    %13 = vsyncpa %s12, 0
    loop: start=0, step=1, limit=4
    $region2: #{tpu_custom_call.1} parent=1 // loop_pre_header
      _
    $region3: #{tpu_custom_call.1} parent=1 // loop_header
      %s15 = sphi 0, %s19
      %p16 = scmp.ge.s32.totalorder %s15, 4
      %s25 = sphi 0, %s27
      %s28 = sphi 0, %s25
      %s29 = sphi 0, %s28
      %s45 = sphi 0, %s29
      %s49 = sphi 0, %s49
      %s51 = sphi 0, %s49
      %s52 = sphi 0, %s51
      %s66 = sphi 0, %s52
      %s72 = sphi 0, %s74
      %s75 = sphi 0, %s72
      %s76 = sphi 0, %s75
      %s92 = sphi 0, %s76
    $region4: #{tpu_custom_call.1} parent=1 // loop_header_branch
      %18 = sbr.rel (%p16) target = $region8
    $region5: #{tpu_custom_call.1} parent=1 // loop_body
      %s20 = ssub.s32 %s15, 1
      %s21 = ssub.s32 %s15, 2
      %s22 = sadd.s32 %s15, 1
      %s23 = ssub.s32 %s15, %s22
      %p24 = scmp.eq.s32.totalorder %s23, 0
      %s26 = sadd.s32 %s25, 1
      %s27 = scalar_select %p24, %s25, %s26
      %p30 = pneg %p24
      %p31 = scmp.eq.s32.totalorder %s15, 1
      %p32 = por %p30, %p31
      %p33 = scmp.ne.s32.totalorder %s25, %s28
      %p34 = scmp.eq.s32.totalorder %s15, 0
      %p35 = por %p33, %p34
      %p36 = scmp.ne.s32.totalorder %s25, %s28
      %p37 = scmp.eq.s32.totalorder %s20, 1
      %p38 = por %p36, %p37
      %p39 = scmp.ne.s32.totalorder %s28, %s29
      %p40 = scmp.eq.s32.totalorder %s20, 0
      %p41 = por %p39, %p40
      %p42 = scmp.ne.s32.totalorder %s28, %s29
      %p43 = scmp.eq.s32.totalorder %s21, 1
      %p44 = por %p42, %p43
      %p46 = scmp.ne.s32.totalorder %s29, %s45
      %p47 = scmp.eq.s32.totalorder %s21, 0
      %p48 = por %p46, %p47
      %s50 = sadd.s32 %s49, 1
      %p53 = scmp.eq.s32.totalorder %s15, 1
      %p54 = scmp.ne.s32.totalorder %s49, %s51
      %p55 = scmp.eq.s32.totalorder %s15, 0
      %p56 = por %p54, %p55
      %p57 = scmp.ne.s32.totalorder %s49, %s51
      %p58 = scmp.eq.s32.totalorder %s20, 1
      %p59 = por %p57, %p58
      %p60 = scmp.ne.s32.totalorder %s51, %s52
      %p61 = scmp.eq.s32.totalorder %s20, 0
      %p62 = por %p60, %p61
      %p63 = scmp.ne.s32.totalorder %s51, %s52
      %p64 = scmp.eq.s32.totalorder %s21, 1
      %p65 = por %p63, %p64
      %p67 = scmp.ne.s32.totalorder %s52, %s66
      %p68 = scmp.eq.s32.totalorder %s21, 0
      %p69 = por %p67, %p68
      %s70 = ssub.s32 %s15, %s22
      %p71 = scmp.eq.s32.totalorder %s70, 0
      %s73 = sadd.s32 %s72, 1
      %s74 = scalar_select %p71, %s72, %s73
      %p77 = pneg %p71
      %p78 = scmp.eq.s32.totalorder %s15, 1
      %p79 = por %p77, %p78
      %p80 = scmp.ne.s32.totalorder %s72, %s75
      %p81 = scmp.eq.s32.totalorder %s15, 0
      %p82 = por %p80, %p81
      %p83 = scmp.ne.s32.totalorder %s72, %s75
      %p84 = scmp.eq.s32.totalorder %s20, 1
      %p85 = por %p83, %p84
      %p86 = scmp.ne.s32.totalorder %s75, %s76
      %p87 = scmp.eq.s32.totalorder %s20, 0
      %p88 = por %p86, %p87
      %p89 = scmp.ne.s32.totalorder %s75, %s76
      %p90 = scmp.eq.s32.totalorder %s21, 1
      %p91 = por %p89, %p90
      %p93 = scmp.ne.s32.totalorder %s76, %s92
      %p94 = scmp.eq.s32.totalorder %s21, 0
      %p95 = por %p93, %p94
      %p96 = scmp.le.s32.totalorder 1, %s15
      %p97 = scmp.lt.s32.totalorder %s15, 3
      %p98 = pnand %p96, %p97
      %p99 = pneg %p98
      // Predicated region
      $region9: #{tpu_custom_call.1} parent=5 // pred_check
        _
      $region10: #{tpu_custom_call.1} parent=5 // pred_check_branch
        %101 = sbr.rel (%p98) target = $region12
      $region11: #{tpu_custom_call.1} parent=5 // pred_region
        %s102 = ssub.s32 %s15, 1
        // Predicated region
        $region13: #{tpu_custom_call.1} parent=11 // pred_check
          %p103 = pneg %p62
        $region14: #{tpu_custom_call.1} parent=11 // pred_check_branch
          %105 = sbr.rel (%p103) target = $region16
        $region15: #{tpu_custom_call.1} parent=11 // pred_region
          %s107 = ssub.s32 128, 128
          %108 = vsyncadd [#allocation6], %s107
          %s110 = sshll.u32 [#allocation5], 4
          %s111 = int_to_ptr.vmem [resolvable:$true] %s110
          %113 = dma.hbm_to_vmem [thread:$0]  %s1, 128, %s111, [#allocation6]
        $region16: #{tpu_custom_call.1} parent=11 // pred_fallthru
          _
      $region12: #{tpu_custom_call.1} parent=5 // pred_fallthru
        _
      %p114 = scmp.lt.s32.totalorder %s15, 2
      // Predicated region
      $region17: #{tpu_custom_call.1} parent=5 // pred_check
        %p115 = pneg %p114
      $region18: #{tpu_custom_call.1} parent=5 // pred_check_branch
        %117 = sbr.rel (%p115) target = $region20
      $region19: #{tpu_custom_call.1} parent=5 // pred_region
        // Predicated region
        $region21: #{tpu_custom_call.1} parent=19 // pred_check
          %p118 = pneg %p35
        $region22: #{tpu_custom_call.1} parent=19 // pred_check_branch
          %120 = sbr.rel (%p118) target = $region24
        $region23: #{tpu_custom_call.1} parent=19 // pred_region
          %s121 = sand.u32 %s25, 1
          %s122 = scalar_lea.sflag [#allocation3], %s121
          %s123 = sand.u32 %s25, 1
          %s124 = smul.addr %s123, 8
          %s125 = scalar_lea.vmem [#allocation2], %s124
          %s127 = ssub.s32 128, 128
          %128 = vsyncadd %s122, %s127
          %s129 = smul.addr %s15, 128
          %s130 = scalar_lea.hbm %s0, %s129
          %s132 = sshll.u32 %s125, 4
          %s133 = int_to_ptr.vmem [resolvable:$true] %s132
          %135 = dma.hbm_to_vmem [thread:$0]  %s130, 128, %s133, %s122
        $region24: #{tpu_custom_call.1} parent=19 // pred_fallthru
          _
      $region20: #{tpu_custom_call.1} parent=5 // pred_fallthru
        _
      %p136 = scmp.le.s32.totalorder 1, %s15
      %p137 = scmp.lt.s32.totalorder %s15, 3
      %p138 = pnand %p136, %p137
      %p139 = pneg %p138
      // Predicated region
      $region25: #{tpu_custom_call.1} parent=5 // pred_check
        _
      $region26: #{tpu_custom_call.1} parent=5 // pred_check_branch
        %141 = sbr.rel (%p138) target = $region28
      $region27: #{tpu_custom_call.1} parent=5 // pred_region
        %s142 = ssub.s32 %s15, 1
        %s143 = sand.u32 %s28, 1
        %s144 = scalar_lea.sflag [#allocation3], %s143
        %s145 = sand.u32 %s28, 1
        %s146 = smul.addr %s145, 8
        %s147 = scalar_lea.vmem [#allocation2], %s146
        // Predicated region
        $region29: #{tpu_custom_call.1} parent=27 // pred_check
          %p148 = pneg %p41
        $region30: #{tpu_custom_call.1} parent=27 // pred_check_branch
          %150 = sbr.rel (%p148) target = $region32
        $region31: #{tpu_custom_call.1} parent=27 // pred_region
          %151 = dma.done %s144, 128
        $region32: #{tpu_custom_call.1} parent=27 // pred_fallthru
          _
        // Predicated region
        $region33: #{tpu_custom_call.1} parent=27 // pred_check
          %p152 = pneg %p62
        $region34: #{tpu_custom_call.1} parent=27 // pred_check_branch
          %154 = sbr.rel (%p152) target = $region36
        $region35: #{tpu_custom_call.1} parent=27 // pred_region
          %155 = dma.done [#allocation6], 128
        $region36: #{tpu_custom_call.1} parent=27 // pred_fallthru
          _
        %s156 = sand.u32 %s28, 1
        %s157 = scalar_lea.sflag [#allocation3], %s156
        %s158 = sand.u32 %s28, 1
        %s159 = smul.addr %s158, 8
        %s160 = scalar_lea.vmem [#allocation2], %s159
        %p161 = pneg %p41
        %p162 = pneg %p38
        %p163 = pneg %p62
        %p164 = pneg %p59
        %p165 = pneg %p88
        %p166 = pneg %p85
        %s167 = sand.u32 %s75, 1
        %s168 = scalar_lea.sflag [#allocation4], %s167
        %s169 = sand.u32 %s75, 1
        %s170 = smul.addr %s169, 8
        %s171 = scalar_lea.vmem [#allocation7], %s170
        %v172 = vld [vmem:[%s147] sm:$0xff]
        %v173 = vld [vmem:[#allocation5] sm:$0xff]
        %v174 = vadd.f32 %v172, %v173
        %175 = vst [vmem:[%s171] sm:$0xff] %v174
        %s176 = sand.u32 %s75, 1
        %s177 = scalar_lea.sflag [#allocation4], %s176
        %s178 = sand.u32 %s75, 1
        %s179 = smul.addr %s178, 8
        %s180 = scalar_lea.vmem [#allocation7], %s179
        // Predicated region
        $region37: #{tpu_custom_call.1} parent=27 // pred_check
          %p181 = pneg %p85
        $region38: #{tpu_custom_call.1} parent=27 // pred_check_branch
          %183 = sbr.rel (%p181) target = $region40
        $region39: #{tpu_custom_call.1} parent=27 // pred_region
          %s185 = ssub.s32 128, 128
          %186 = vsyncadd %s177, %s185
          %s187 = smul.addr %s20, 128
          %s188 = scalar_lea.hbm %s2, %s187
          %s190 = sshll.u32 %s180, 4
          %s191 = int_to_ptr.vmem [resolvable:$true] %s190
          %193 = dma.vmem_to_hbm [thread:$0]  %s191, 128, %s188, %s177
        $region40: #{tpu_custom_call.1} parent=27 // pred_fallthru
          _
      $region28: #{tpu_custom_call.1} parent=5 // pred_fallthru
        _
      %p194 = scmp.le.s32.totalorder 2, %s15
      // Predicated region
      $region41: #{tpu_custom_call.1} parent=5 // pred_check
        %p195 = pneg %p194
      $region42: #{tpu_custom_call.1} parent=5 // pred_check_branch
        %197 = sbr.rel (%p195) target = $region44
      $region43: #{tpu_custom_call.1} parent=5 // pred_region
        %s198 = ssub.s32 %s15, 2
        // Predicated region
        $region45: #{tpu_custom_call.1} parent=43 // pred_check
          %p199 = pneg %p91
        $region46: #{tpu_custom_call.1} parent=43 // pred_check_branch
          %201 = sbr.rel (%p199) target = $region48
        $region47: #{tpu_custom_call.1} parent=43 // pred_region
          %s202 = sand.u32 %s76, 1
          %s203 = scalar_lea.sflag [#allocation4], %s202
          %s204 = sand.u32 %s76, 1
          %s205 = smul.addr %s204, 8
          %s206 = scalar_lea.vmem [#allocation7], %s205
          %207 = dma.done %s203, 128
        $region48: #{tpu_custom_call.1} parent=43 // pred_fallthru
          _
      $region44: #{tpu_custom_call.1} parent=5 // pred_fallthru
        _
    $region6: #{tpu_custom_call.1} parent=1 // loop_footer
      %s19 = sadd.s32 1, %s15
    $region7: #{tpu_custom_call.1} parent=1 // loop_footer_branch
      %14 = sbr.rel target = $region3
    $region8: #{tpu_custom_call.1} parent=1 // loop_exit
      _
    %208 = vsyncpa [#allocation3], 1
    %s209 = scalar_lea.sflag [#allocation3], 1
    %210 = vsyncpa %s209, 1
    %211 = vsyncpa [#allocation6], 1
    %212 = vsyncpa [#allocation4], 1
    %s213 = scalar_lea.sflag [#allocation4], 1
    %214 = vsyncpa %s213, 1

// kernel: _forward_impl.1
$region0: #{_forward_impl.1}
  #allocation0 [shape = 'u32[]', space=smem, size = 0x4, offset = 0x4, fixed_abs, tag = 'smem constant byte address 0x4 - core index']
  #allocation1 [shape = 'u32[144,128]{1,0:T(1,128)}', space=vmem, size = 0x12000, scoped, tag = 'internal scratch']
  %s0 = inlined_call_operand.vmem [shape: f32[32,128], index: 0, kind: input, shape index: {}]
  %s1 = inlined_call_operand.hbm [shape: f32[128,128], index: 1, kind: input, shape index: {}]
  %s2 = inlined_call_operand.vmem [shape: f32[3,128], index: 2, kind: input, shape index: {}]
  %s3 = inlined_call_operand.hbm [shape: f32[128,128], index: 3, kind: input, shape index: {}]
  %s4 = inlined_call_operand.vmem [shape: f32[3,128], index: 4, kind: input, shape index: {}]
  %s5 = inlined_call_operand.hbm [shape: f32[128,128], index: 5, kind: input, shape index: {}]
  %s6 = inlined_call_operand.vmem [shape: f32[1,128], index: 6, kind: input, shape index: {}]
  %s7 = inlined_call_operand.vmem [shape: f32[32,128], index: 7, kind: output, shape index: {}]
  %s8 = sld [smem:[#allocation0]]
  $region73: #{_forward_impl.1} parent=0
    _
  %s10 = ssub.s32 1, %s8
  %s11 = scalar_select 0, %s10, %s8
  $region1: #{_forward_impl.1} parent=0
    #allocation2 [shape = 'u8[65536]{0}', space=vmem, size = 0x10000, scoped, tag = 'input window, operand 1, single buffered']
    #allocation3 [shape = 's32[2]{0}', space=sflag, size = 0x8, scoped, tag = 'scoped memory for _forward_impl.1']
    #allocation4 [shape = 'u8[65536]{0}', space=vmem, size = 0x10000, scoped, tag = 'input window, operand 3, single buffered']
    #allocation5 [shape = 's32[1]{0}', space=sflag, size = 0x4, scoped, tag = 'scoped memory for _forward_impl.1']
    #allocation6 [shape = 'u8[65536]{0}', space=vmem, size = 0x10000, scoped, tag = 'input window, operand 5, single buffered']
    %12 = vsyncpa [#allocation3], 0
    %13 = vsyncpa [#allocation5], 0
    loop: start=0, step=1, limit=4
    $region2: #{_forward_impl.1} parent=1 // loop_pre_header
      _
    $region3: #{_forward_impl.1} parent=1 // loop_header
      %s15 = sphi 0, %s19
      %p16 = scmp.ge.s32.totalorder %s15, 4
      %s25 = sphi 0, %s27
      %s28 = sphi 0, %s25
      %s29 = sphi 0, %s28
      %s45 = sphi 0, %s29
      %s49 = sphi 0, %s49
      %s51 = sphi 0, %s49
      %s52 = sphi 0, %s51
      %s66 = sphi 0, %s52
      %s70 = sphi 0, %s70
      %s72 = sphi 0, %s70
      %s73 = sphi 0, %s72
      %s87 = sphi 0, %s73
      %s91 = sphi 0, %s91
      %s93 = sphi 0, %s91
      %s94 = sphi 0, %s93
      %s108 = sphi 0, %s94
      %s112 = sphi 0, %s112
      %s114 = sphi 0, %s112
      %s115 = sphi 0, %s114
      %s129 = sphi 0, %s115
      %s133 = sphi 0, %s133
      %s135 = sphi 0, %s133
      %s136 = sphi 0, %s135
      %s150 = sphi 0, %s136
      %s154 = sphi 0, %s154
      %s156 = sphi 0, %s154
      %s157 = sphi 0, %s156
      %s171 = sphi 0, %s157
      %s177 = sphi 0, %s179
      %s180 = sphi 0, %s177
      %s181 = sphi 0, %s180
      %s197 = sphi 0, %s181
    $region4: #{_forward_impl.1} parent=1 // loop_header_branch
      %18 = sbr.rel (%p16) target = $region8
    $region5: #{_forward_impl.1} parent=1 // loop_body
      %s20 = ssub.s32 %s15, 1
      %s21 = ssub.s32 %s15, 2
      %s22 = sadd.s32 %s15, 1
      %s23 = ssub.s32 %s15, %s22
      %p24 = scmp.eq.s32.totalorder %s23, 0
      %s26 = sadd.s32 %s25, 1
      %s27 = scalar_select %p24, %s25, %s26
      %p30 = pneg %p24
      %p31 = scmp.eq.s32.totalorder %s15, 1
      %p32 = por %p30, %p31
      %p33 = scmp.ne.s32.totalorder %s25, %s28
      %p34 = scmp.eq.s32.totalorder %s15, 0
      %p35 = por %p33, %p34
      %p36 = scmp.ne.s32.totalorder %s25, %s28
      %p37 = scmp.eq.s32.totalorder %s20, 1
      %p38 = por %p36, %p37
      %p39 = scmp.ne.s32.totalorder %s28, %s29
      %p40 = scmp.eq.s32.totalorder %s20, 0
      %p41 = por %p39, %p40
      %p42 = scmp.ne.s32.totalorder %s28, %s29
      %p43 = scmp.eq.s32.totalorder %s21, 1
      %p44 = por %p42, %p43
      %p46 = scmp.ne.s32.totalorder %s29, %s45
      %p47 = scmp.eq.s32.totalorder %s21, 0
      %p48 = por %p46, %p47
      %s50 = sadd.s32 %s49, 1
      %p53 = scmp.eq.s32.totalorder %s15, 1
      %p54 = scmp.ne.s32.totalorder %s49, %s51
      %p55 = scmp.eq.s32.totalorder %s15, 0
      %p56 = por %p54, %p55
      %p57 = scmp.ne.s32.totalorder %s49, %s51
      %p58 = scmp.eq.s32.totalorder %s20, 1
      %p59 = por %p57, %p58
      %p60 = scmp.ne.s32.totalorder %s51, %s52
      %p61 = scmp.eq.s32.totalorder %s20, 0
      %p62 = por %p60, %p61
      %p63 = scmp.ne.s32.totalorder %s51, %s52
      %p64 = scmp.eq.s32.totalorder %s21, 1
      %p65 = por %p63, %p64
      %p67 = scmp.ne.s32.totalorder %s52, %s66
      %p68 = scmp.eq.s32.totalorder %s21, 0
      %p69 = por %p67, %p68
      %s71 = sadd.s32 %s70, 1
      %p74 = scmp.eq.s32.totalorder %s15, 1
      %p75 = scmp.ne.s32.totalorder %s70, %s72
      %p76 = scmp.eq.s32.totalorder %s15, 0
      %p77 = por %p75, %p76
      %p78 = scmp.ne.s32.totalorder %s70, %s72
      %p79 = scmp.eq.s32.totalorder %s20, 1
      %p80 = por %p78, %p79
      %p81 = scmp.ne.s32.totalorder %s72, %s73
      %p82 = scmp.eq.s32.totalorder %s20, 0
      %p83 = por %p81, %p82
      %p84 = scmp.ne.s32.totalorder %s72, %s73
      %p85 = scmp.eq.s32.totalorder %s21, 1
      %p86 = por %p84, %p85
      %p88 = scmp.ne.s32.totalorder %s73, %s87
      %p89 = scmp.eq.s32.totalorder %s21, 0
      %p90 = por %p88, %p89
      %s92 = sadd.s32 %s91, 1
      %p95 = scmp.eq.s32.totalorder %s15, 1
      %p96 = scmp.ne.s32.totalorder %s91, %s93
      %p97 = scmp.eq.s32.totalorder %s15, 0
      %p98 = por %p96, %p97
      %p99 = scmp.ne.s32.totalorder %s91, %s93
      %p100 = scmp.eq.s32.totalorder %s20, 1
      %p101 = por %p99, %p100
      %p102 = scmp.ne.s32.totalorder %s93, %s94
      %p103 = scmp.eq.s32.totalorder %s20, 0
      %p104 = por %p102, %p103
      %p105 = scmp.ne.s32.totalorder %s93, %s94
      %p106 = scmp.eq.s32.totalorder %s21, 1
      %p107 = por %p105, %p106
      %p109 = scmp.ne.s32.totalorder %s94, %s108
      %p110 = scmp.eq.s32.totalorder %s21, 0
      %p111 = por %p109, %p110
      %s113 = sadd.s32 %s112, 1
      %p116 = scmp.eq.s32.totalorder %s15, 1
      %p117 = scmp.ne.s32.totalorder %s112, %s114
      %p118 = scmp.eq.s32.totalorder %s15, 0
      %p119 = por %p117, %p118
      %p120 = scmp.ne.s32.totalorder %s112, %s114
      %p121 = scmp.eq.s32.totalorder %s20, 1
      %p122 = por %p120, %p121
      %p123 = scmp.ne.s32.totalorder %s114, %s115
      %p124 = scmp.eq.s32.totalorder %s20, 0
      %p125 = por %p123, %p124
      %p126 = scmp.ne.s32.totalorder %s114, %s115
      %p127 = scmp.eq.s32.totalorder %s21, 1
      %p128 = por %p126, %p127
      %p130 = scmp.ne.s32.totalorder %s115, %s129
      %p131 = scmp.eq.s32.totalorder %s21, 0
      %p132 = por %p130, %p131
      %s134 = sadd.s32 %s133, 1
      %p137 = scmp.eq.s32.totalorder %s15, 1
      %p138 = scmp.ne.s32.totalorder %s133, %s135
      %p139 = scmp.eq.s32.totalorder %s15, 0
      %p140 = por %p138, %p139
      %p141 = scmp.ne.s32.totalorder %s133, %s135
      %p142 = scmp.eq.s32.totalorder %s20, 1
      %p143 = por %p141, %p142
      %p144 = scmp.ne.s32.totalorder %s135, %s136
      %p145 = scmp.eq.s32.totalorder %s20, 0
      %p146 = por %p144, %p145
      %p147 = scmp.ne.s32.totalorder %s135, %s136
      %p148 = scmp.eq.s32.totalorder %s21, 1
      %p149 = por %p147, %p148
      %p151 = scmp.ne.s32.totalorder %s136, %s150
      %p152 = scmp.eq.s32.totalorder %s21, 0
      %p153 = por %p151, %p152
      %s155 = sadd.s32 %s154, 1
      %p158 = scmp.eq.s32.totalorder %s15, 1
      %p159 = scmp.ne.s32.totalorder %s154, %s156
      %p160 = scmp.eq.s32.totalorder %s15, 0
      %p161 = por %p159, %p160
      %p162 = scmp.ne.s32.totalorder %s154, %s156
      %p163 = scmp.eq.s32.totalorder %s20, 1
      %p164 = por %p162, %p163
      %p165 = scmp.ne.s32.totalorder %s156, %s157
      %p166 = scmp.eq.s32.totalorder %s20, 0
      %p167 = por %p165, %p166
      %p168 = scmp.ne.s32.totalorder %s156, %s157
      %p169 = scmp.eq.s32.totalorder %s21, 1
      %p170 = por %p168, %p169
      %p172 = scmp.ne.s32.totalorder %s157, %s171
      %p173 = scmp.eq.s32.totalorder %s21, 0
      %p174 = por %p172, %p173
      %s175 = ssub.s32 %s15, %s22
      %p176 = scmp.eq.s32.totalorder %s175, 0
      %s178 = sadd.s32 %s177, 1
      %s179 = scalar_select %p176, %s177, %s178
      %p182 = pneg %p176
      %p183 = scmp.eq.s32.totalorder %s15, 1
      %p184 = por %p182, %p183
      %p185 = scmp.ne.s32.totalorder %s177, %s180
      %p186 = scmp.eq.s32.totalorder %s15, 0
      %p187 = por %p185, %p186
      %p188 = scmp.ne.s32.totalorder %s177, %s180
      %p189 = scmp.eq.s32.totalorder %s20, 1
      %p190 = por %p188, %p189
      %p191 = scmp.ne.s32.totalorder %s180, %s181
      %p192 = scmp.eq.s32.totalorder %s20, 0
      %p193 = por %p191, %p192
      %p194 = scmp.ne.s32.totalorder %s180, %s181
      %p195 = scmp.eq.s32.totalorder %s21, 1
      %p196 = por %p194, %p195
      %p198 = scmp.ne.s32.totalorder %s181, %s197
      %p199 = scmp.eq.s32.totalorder %s21, 0
      %p200 = por %p198, %p199
      %p201 = scmp.le.s32.totalorder 1, %s15
      %p202 = scmp.lt.s32.totalorder %s15, 3
      %p203 = pnand %p201, %p202
      %p204 = pneg %p203
      // Predicated region
      $region9: #{_forward_impl.1} parent=5 // pred_check
        _
      $region10: #{_forward_impl.1} parent=5 // pred_check_branch
        %206 = sbr.rel (%p203) target = $region12
      $region11: #{_forward_impl.1} parent=5 // pred_region
        %s207 = ssub.s32 %s15, 1
        // Predicated region
        $region13: #{_forward_impl.1} parent=11 // pred_check
          %p208 = pneg %p62
        $region14: #{_forward_impl.1} parent=11 // pred_check_branch
          %210 = sbr.rel (%p208) target = $region16
        $region15: #{_forward_impl.1} parent=11 // pred_region
          %s212 = ssub.s32 2048, 2048
          %213 = vsyncadd [#allocation3], %s212
          %s214 = sshll.u32 [#allocation2], 4
          %s215 = int_to_ptr.vmem [resolvable:$true] %s214
          %220 = dma.hbm_to_vmem [thread:$0]  %s1, 2048, %s215, [#allocation3], 128, 128, 8
        $region16: #{_forward_impl.1} parent=11 // pred_fallthru
          _
        // Predicated region
        $region17: #{_forward_impl.1} parent=11 // pred_check
          %p221 = pneg %p83
        $region18: #{_forward_impl.1} parent=11 // pred_check_branch
          %223 = sbr.rel (%p221) target = $region20
        $region19: #{_forward_impl.1} parent=11 // pred_region
          _
        $region20: #{_forward_impl.1} parent=11 // pred_fallthru
          _
        // Predicated region
        $region21: #{_forward_impl.1} parent=11 // pred_check
          %p224 = pneg %p104
        $region22: #{_forward_impl.1} parent=11 // pred_check_branch
          %226 = sbr.rel (%p224) target = $region24
        $region23: #{_forward_impl.1} parent=11 // pred_region
          %s228 = ssub.s32 2048, 2048
          %229 = vsyncadd [#allocation5], %s228
          %s230 = sshll.u32 [#allocation4], 4
          %s231 = int_to_ptr.vmem [resolvable:$true] %s230
          %236 = dma.hbm_to_vmem [thread:$0]  %s3, 2048, %s231, [#allocation5], 128, 128, 8
        $region24: #{_forward_impl.1} parent=11 // pred_fallthru
          _
        // Predicated region
        $region25: #{_forward_impl.1} parent=11 // pred_check
          %p237 = pneg %p125
        $region26: #{_forward_impl.1} parent=11 // pred_check_branch
          %239 = sbr.rel (%p237) target = $region28
        $region27: #{_forward_impl.1} parent=11 // pred_region
          _
        $region28: #{_forward_impl.1} parent=11 // pred_fallthru
          _
        // Predicated region
        $region29: #{_forward_impl.1} parent=11 // pred_check
          %p240 = pneg %p146
        $region30: #{_forward_impl.1} parent=11 // pred_check_branch
          %242 = sbr.rel (%p240) target = $region32
        $region31: #{_forward_impl.1} parent=11 // pred_region
          %s244 = ssub.s32 2048, 2048
          %245 = vsyncadd [#allocation5], %s244
          %s246 = sshll.u32 [#allocation6], 4
          %s247 = int_to_ptr.vmem [resolvable:$true] %s246
          %252 = dma.hbm_to_vmem [thread:$0]  %s5, 2048, %s247, [#allocation5], 128, 128, 8
        $region32: #{_forward_impl.1} parent=11 // pred_fallthru
          _
        // Predicated region
        $region33: #{_forward_impl.1} parent=11 // pred_check
          %p253 = pneg %p167
        $region34: #{_forward_impl.1} parent=11 // pred_check_branch
          %255 = sbr.rel (%p253) target = $region36
        $region35: #{_forward_impl.1} parent=11 // pred_region
          _
        $region36: #{_forward_impl.1} parent=11 // pred_fallthru
          _
      $region12: #{_forward_impl.1} parent=5 // pred_fallthru
        _
      %p256 = scmp.lt.s32.totalorder %s15, 2
      // Predicated region
      $region37: #{_forward_impl.1} parent=5 // pred_check
        %p257 = pneg %p256
      $region38: #{_forward_impl.1} parent=5 // pred_check_branch
        %259 = sbr.rel (%p257) target = $region40
      $region39: #{_forward_impl.1} parent=5 // pred_region
        // Predicated region
        $region41: #{_forward_impl.1} parent=39 // pred_check
          %p260 = pneg %p35
        $region42: #{_forward_impl.1} parent=39 // pred_check_branch
          %262 = sbr.rel (%p260) target = $region44
        $region43: #{_forward_impl.1} parent=39 // pred_region
          %s263 = smul.u32 2, %s15
          %p264 = scmp.lt.s32.totalorder %s263, 3
          %s265 = scalar_select %p264, %s263, 3
          %s266 = smul.addr %s265, 8
          %s267 = scalar_lea.vmem %s0, %s266
          %s268 = smul.u32 2, %s15
        $region44: #{_forward_impl.1} parent=39 // pred_fallthru
          _
      $region40: #{_forward_impl.1} parent=5 // pred_fallthru
        _
      %p269 = scmp.le.s32.totalorder 1, %s15
      %p270 = scmp.lt.s32.totalorder %s15, 3
      %p271 = pnand %p269, %p270
      %p272 = pneg %p271
      // Predicated region
      $region45: #{_forward_impl.1} parent=5 // pred_check
        _
      $region46: #{_forward_impl.1} parent=5 // pred_check_branch
        %274 = sbr.rel (%p271) target = $region48
      $region47: #{_forward_impl.1} parent=5 // pred_region
        %s275 = ssub.s32 %s15, 1
        // Predicated region
        $region49: #{_forward_impl.1} parent=47 // pred_check
          %p276 = pneg %p62
        $region50: #{_forward_impl.1} parent=47 // pred_check_branch
          %278 = sbr.rel (%p276) target = $region52
        $region51: #{_forward_impl.1} parent=47 // pred_region
          %279 = dma.done [#allocation3], 2048
        $region52: #{_forward_impl.1} parent=47 // pred_fallthru
          _
        // Predicated region
        $region53: #{_forward_impl.1} parent=47 // pred_check
          %p280 = pneg %p104
        $region54: #{_forward_impl.1} parent=47 // pred_check_branch
          %282 = sbr.rel (%p280) target = $region56
        $region55: #{_forward_impl.1} parent=47 // pred_region
          %283 = dma.done [#allocation5], 2048
        $region56: #{_forward_impl.1} parent=47 // pred_fallthru
          _
        // Predicated region
        $region57: #{_forward_impl.1} parent=47 // pred_check
          %p284 = pneg %p146
        $region58: #{_forward_impl.1} parent=47 // pred_check_branch
          %286 = sbr.rel (%p284) target = $region60
        $region59: #{_forward_impl.1} parent=47 // pred_region
          %287 = dma.done [#allocation5], 2048
        $region60: #{_forward_impl.1} parent=47 // pred_fallthru
          _
        %s288 = smul.u32 2, %s20
        %p289 = scmp.lt.s32.totalorder %s288, 3
        %s290 = scalar_select %p289, %s288, 3
        %s291 = smul.addr %s290, 8
        %s292 = scalar_lea.vmem %s0, %s291
        %p293 = pneg %p41
        %p294 = pneg %p38
        %p295 = pneg %p62
        %p296 = pneg %p59
        %p297 = pneg %p83
        %p298 = pneg %p80
        %p299 = pneg %p104
        %p300 = pneg %p101
        %p301 = pneg %p125
        %p302 = pneg %p122
        %p303 = pneg %p146
        %p304 = pneg %p143
        %p305 = pneg %p167
        %p306 = pneg %p164
        %p307 = pneg %p193
        %p308 = pneg %p190
        %s309 = smul.u32 2, %s20
        %p310 = scmp.lt.s32.totalorder %s309, 3
        %s311 = scalar_select %p310, %s309, 3
        %s312 = smul.addr %s311, 8
        %s313 = scalar_lea.vmem %s7, %s312
        %s314 = smul.u32 2, %s20
        %p315 = scmp.lt.s32.totalorder %s314, 3
        %s316 = scalar_select %p315, %s314, 3
        %s317 = smul.addr %s316, 8
        %s318 = scalar_lea.vmem %s0, %s317
        %s319 = smul.u32 2, %s20
        %s320 = smul.u32 2, %s20
        %p321 = scmp.lt.s32.totalorder %s320, 3
        %s322 = scalar_select %p321, %s320, 3
        %s323 = smul.addr %s322, 8
        %s324 = scalar_lea.vmem %s7, %s323
        %s325 = smul.u32 2, %s20
        %v326 = vld [vmem:[%s318] sm:$0xff]
        %v327 = vld [vmem:[%s318 + $0x8] sm:$0xff]
        %v328 = vld [vmem:[%s2] sm:$0x7]
        %v329 = vld [vmem:[%s4] sm:$0x7]
        %v330 = vld [vmem:[%s6] sm:$0x1]
        %v331 = vld [vmem:[#allocation2] sm:$0xff]
        %v332 = vld [vmem:[#allocation2 + $0x8] sm:$0xff]
        %v333 = vld [vmem:[#allocation2 + $0x10] sm:$0xff]
        %v334 = vld [vmem:[#allocation2 + $0x18] sm:$0xff]
        %v335 = vld [vmem:[#allocation2 + $0x20] sm:$0xff]
        %v336 = vld [vmem:[#allocation2 + $0x28] sm:$0xff]
        %v337 = vld [vmem:[#allocation2 + $0x30] sm:$0xff]
        %v338 = vld [vmem:[#allocation2 + $0x38] sm:$0xff]
        %v339 = vld [vmem:[#allocation2 + $0x40] sm:$0xff]
        %v340 = vld [vmem:[#allocation2 + $0x48] sm:$0xff]
        %v341 = vld [vmem:[#allocation2 + $0x50] sm:$0xff]
        %v342 = vld [vmem:[#allocation2 + $0x58] sm:$0xff]
        %v343 = vld [vmem:[#allocation2 + $0x60] sm:$0xff]
        %v344 = vld [vmem:[#allocation2 + $0x68] sm:$0xff]
        %v345 = vld [vmem:[#allocation2 + $0x70] sm:$0xff]
        %v346 = vld [vmem:[#allocation2 + $0x78] sm:$0xff]
        %v347 = vlaneseq
        %v348 = vshrl.u32 %v347, 7
        %v349 = vsub.s32 0, %v348
        %v350 = vrot.slane %v328, %v349
        %351 = vmatprep.subr.mxu0 0.0
        %352 = vmatpush1.msra.mxu0 %v331
        %353 = vmatprep.subr.mxu0 0.0
        %354 = vmatpush1.msra.mxu0 %v332
        %355 = vmatprep.subr.mxu0 0.0
        %356 = vmatpush1.msra.mxu0 %v333
        %357 = vmatprep.subr.mxu0 0.0
        %358 = vmatpush1.msra.mxu0 %v334
        %359 = vmatprep.subr.mxu0 0.0
        %360 = vmatpush1.msra.mxu0 %v335
        %361 = vmatprep.subr.mxu0 0.0
        %362 = vmatpush1.msra.mxu0 %v336
        %363 = vmatprep.subr.mxu0 0.0
        %364 = vmatpush1.msra.mxu0 %v337
        %365 = vmatprep.subr.mxu0 0.0
        %366 = vmatpush1.msra.mxu0 %v338
        %367 = vmatprep.subr.mxu0 0.0
        %368 = vmatpush1.msra.mxu0 %v339
        %369 = vmatprep.subr.mxu0 0.0
        %370 = vmatpush1.msra.mxu0 %v340
        %371 = vmatprep.subr.mxu0 0.0
        %372 = vmatpush1.msra.mxu0 %v341
        %373 = vmatprep.subr.mxu0 0.0
        %374 = vmatpush1.msra.mxu0 %v342
        %375 = vmatprep.subr.mxu0 0.0
        %376 = vmatpush1.msra.mxu0 %v343
        %377 = vmatprep.subr.mxu0 0.0
        %378 = vmatpush1.msra.mxu0 %v344
        %379 = vmatprep.subr.mxu0 0.0
        %380 = vmatpush1.msra.mxu0 %v345
        %381 = vmatprep.subr.mxu0 0.0
        %382 = vmatpush1.msra.mxu0 %v346
        %383 = vmatprep.subr.mxu0 0.0
        %384 = vmatpush1.msra.mxu0 0.0
        %385 = vmatprep.subr.mxu0 0.0
        %386 = vmatpush1.msra.mxu0 0.0
        %387 = vmatprep.subr.mxu0 0.0
        %388 = vmatpush1.msra.mxu0 0.0
        %389 = vmatprep.subr.mxu0 0.0
        %390 = vmatpush1.msra.mxu0 0.0
        %391 = vmatprep.subr.mxu0 0.0
        %392 = vmatpush1.msra.mxu0 0.0
        %393 = vmatprep.subr.mxu0 0.0
        %394 = vmatpush1.msra.mxu0 0.0
        %395 = vmatprep.subr.mxu0 0.0
        %396 = vmatpush1.msra.mxu0 0.0
        %397 = vmatprep.subr.mxu0 0.0
        %398 = vmatpush1.msra.mxu0 0.0
        %399 = vmatprep.subr.mxu0 0.0
        %400 = vmatpush1.msra.mxu0 0.0
        %401 = vmatprep.subr.mxu0 0.0
        %402 = vmatpush1.msra.mxu0 0.0
        %403 = vmatprep.subr.mxu0 0.0
        %404 = vmatpush1.msra.mxu0 0.0
        %405 = vmatprep.subr.mxu0 0.0
        %406 = vmatpush1.msra.mxu0 0.0
        %407 = vmatprep.subr.mxu0 0.0
        %408 = vmatpush1.msra.mxu0 0.0
        %409 = vmatprep.subr.mxu0 0.0
        %410 = vmatpush1.msra.mxu0 0.0
        %411 = vmatprep.subr.mxu0 0.0
        %412 = vmatpush1.msra.mxu0 0.0
        %413 = vmatprep.subr.mxu0 0.0
        %414 = vmatpush1.msra.mxu0 0.0
        %415 = vmatprep.mubr.f32.mxu0 0.0
        %416 = vmatmul.mubr.f32.gmra.mrb[0].mxu0 %v326
        %v417 = vpop.f32.mrb[0].mxu0
        %v418 = vadd.f32 %v350, %v417
        %v419 = vpop.f32.mrb[0].mxu0
        %420 = vmatprep.mubr.f32.mxu0 0.0
        %421 = vmatmul.mubr.f32.gmra.mrb[0].mxu0 %v327
        %v422 = vpop.f32.mrb[0].mxu0
        %v423 = vadd.f32 %v350, %v422
        %v424 = vpop.f32.mrb[0].mxu0
        %425 = vdwg.mxu0
        %v426 = vmul.f32 %v418, 0.5
        %v427 = vmul.f32 %v423, 0.5
        %v428 = vmul.f32 %v418, 0.70710677
        %v429 = vmul.f32 %v423, 0.70710677
        %v430 = verf.f32.pop %v428
        %v431 = verf.f32.pop %v429
        %v432 = vadd.f32 %v430, 1.0
        %v433 = vadd.f32 %v431, 1.0
        %v434 = vmul.f32 %v426, %v432
        %v435 = vmul.f32 %v427, %v433
        %v436 = vlaneseq
        %v437 = vshrl.u32 %v436, 7
        %v438 = vsub.s32 1, %v437
        %v439 = vrot.slane %v328, %v438
        %v440 = vmul.f32 %v434, %v439
        %v441 = vmul.f32 %v435, %v439
        %v442 = vlaneseq
        %v443 = vshrl.u32 %v442, 7
        %v444 = vsub.s32 2, %v443
        %v445 = vrot.slane %v328, %v444
        %v446 = vadd.f32 %v440, %v445
        %v447 = vadd.f32 %v441, %v445
        %v448 = vld [vmem:[#allocation4] sm:$0xff]
        %v449 = vld [vmem:[#allocation4 + $0x8] sm:$0xff]
        %v450 = vld [vmem:[#allocation4 + $0x10] sm:$0xff]
        %v451 = vld [vmem:[#allocation4 + $0x18] sm:$0xff]
        %v452 = vld [vmem:[#allocation4 + $0x20] sm:$0xff]
        %v453 = vld [vmem:[#allocation4 + $0x28] sm:$0xff]
        %v454 = vld [vmem:[#allocation4 + $0x30] sm:$0xff]
        %v455 = vld [vmem:[#allocation4 + $0x38] sm:$0xff]
        %v456 = vld [vmem:[#allocation4 + $0x40] sm:$0xff]
        %v457 = vld [vmem:[#allocation4 + $0x48] sm:$0xff]
        %v458 = vld [vmem:[#allocation4 + $0x50] sm:$0xff]
        %v459 = vld [vmem:[#allocation4 + $0x58] sm:$0xff]
        %v460 = vld [vmem:[#allocation4 + $0x60] sm:$0xff]
        %v461 = vld [vmem:[#allocation4 + $0x68] sm:$0xff]
        %v462 = vld [vmem:[#allocation4 + $0x70] sm:$0xff]
        %v463 = vld [vmem:[#allocation4 + $0x78] sm:$0xff]
        %v464 = vlaneseq
        %v465 = vshrl.u32 %v464, 7
        %v466 = vsub.s32 0, %v465
        %v467 = vrot.slane %v329, %v466
        %468 = vmatprep.subr.mxu0 0.0
        %469 = vmatpush1.msra.mxu0 %v448
        %470 = vmatprep.subr.mxu0 0.0
        %471 = vmatpush1.msra.mxu0 %v449
        %472 = vmatprep.subr.mxu0 0.0
        %473 = vmatpush1.msra.mxu0 %v450
        %474 = vmatprep.subr.mxu0 0.0
        %475 = vmatpush1.msra.mxu0 %v451
        %476 = vmatprep.subr.mxu0 0.0
        %477 = vmatpush1.msra.mxu0 %v452
        %478 = vmatprep.subr.mxu0 0.0
        %479 = vmatpush1.msra.mxu0 %v453
        %480 = vmatprep.subr.mxu0 0.0
        %481 = vmatpush1.msra.mxu0 %v454
        %482 = vmatprep.subr.mxu0 0.0
        %483 = vmatpush1.msra.mxu0 %v455
        %484 = vmatprep.subr.mxu0 0.0
        %485 = vmatpush1.msra.mxu0 %v456
        %486 = vmatprep.subr.mxu0 0.0
        %487 = vmatpush1.msra.mxu0 %v457
        %488 = vmatprep.subr.mxu0 0.0
        %489 = vmatpush1.msra.mxu0 %v458
        %490 = vmatprep.subr.mxu0 0.0
        %491 = vmatpush1.msra.mxu0 %v459
        %492 = vmatprep.subr.mxu0 0.0
        %493 = vmatpush1.msra.mxu0 %v460
        %494 = vmatprep.subr.mxu0 0.0
        %495 = vmatpush1.msra.mxu0 %v461
        %496 = vmatprep.subr.mxu0 0.0
        %497 = vmatpush1.msra.mxu0 %v462
        %498 = vmatprep.subr.mxu0 0.0
        %499 = vmatpush1.msra.mxu0 %v463
        %500 = vmatprep.subr.mxu0 0.0
        %501 = vmatpush1.msra.mxu0 0.0
        %502 = vmatprep.subr.mxu0 0.0
        %503 = vmatpush1.msra.mxu0 0.0
        %504 = vmatprep.subr.mxu0 0.0
        %505 = vmatpush1.msra.mxu0 0.0
        %506 = vmatprep.subr.mxu0 0.0
        %507 = vmatpush1.msra.mxu0 0.0
        %508 = vmatprep.subr.mxu0 0.0
        %509 = vmatpush1.msra.mxu0 0.0
        %510 = vmatprep.subr.mxu0 0.0
        %511 = vmatpush1.msra.mxu0 0.0
        %512 = vmatprep.subr.mxu0 0.0
        %513 = vmatpush1.msra.mxu0 0.0
        %514 = vmatprep.subr.mxu0 0.0
        %515 = vmatpush1.msra.mxu0 0.0
        %516 = vmatprep.subr.mxu0 0.0
        %517 = vmatpush1.msra.mxu0 0.0
        %518 = vmatprep.subr.mxu0 0.0
        %519 = vmatpush1.msra.mxu0 0.0
        %520 = vmatprep.subr.mxu0 0.0
        %521 = vmatpush1.msra.mxu0 0.0
        %522 = vmatprep.subr.mxu0 0.0
        %523 = vmatpush1.msra.mxu0 0.0
        %524 = vmatprep.subr.mxu0 0.0
        %525 = vmatpush1.msra.mxu0 0.0
        %526 = vmatprep.subr.mxu0 0.0
        %527 = vmatpush1.msra.mxu0 0.0
        %528 = vmatprep.subr.mxu0 0.0
        %529 = vmatpush1.msra.mxu0 0.0
        %530 = vmatprep.subr.mxu0 0.0
        %531 = vmatpush1.msra.mxu0 0.0
        %532 = vmatprep.mubr.f32.mxu0 0.0
        %533 = vmatmul.mubr.f32.gmra.mrb[0].mxu0 %v446
        %v534 = vpop.f32.mrb[0].mxu0
        %v535 = vadd.f32 %v467, %v534
        %v536 = vpop.f32.mrb[0].mxu0
        %537 = vmatprep.mubr.f32.mxu0 0.0
        %538 = vmatmul.mubr.f32.gmra.mrb[0].mxu0 %v447
        %v539 = vpop.f32.mrb[0].mxu0
        %v540 = vadd.f32 %v467, %v539
        %v541 = vpop.f32.mrb[0].mxu0
        %542 = vdwg.mxu0
        %v543 = vmul.f32 %v535, 0.5
        %v544 = vmul.f32 %v540, 0.5
        %v545 = vmul.f32 %v535, 0.70710677
        %v546 = vmul.f32 %v540, 0.70710677
        %v547 = verf.f32.pop %v545
        %v548 = verf.f32.pop %v546
        %v549 = vadd.f32 %v547, 1.0
        %v550 = vadd.f32 %v548, 1.0
        %v551 = vmul.f32 %v543, %v549
        %v552 = vmul.f32 %v544, %v550
        %v553 = vlaneseq
        %v554 = vshrl.u32 %v553, 7
        %v555 = vsub.s32 1, %v554
        %v556 = vrot.slane %v329, %v555
        %v557 = vmul.f32 %v551, %v556
        %v558 = vmul.f32 %v552, %v556
        %v559 = vlaneseq
        %v560 = vshrl.u32 %v559, 7
        %v561 = vsub.s32 2, %v560
        %v562 = vrot.slane %v329, %v561
        %v563 = vadd.f32 %v557, %v562
        %v564 = vadd.f32 %v558, %v562
        %v565 = vadd.f32 %v446, %v563
        %v566 = vadd.f32 %v447, %v564
        %v567 = vld [vmem:[#allocation6] sm:$0xff]
        %v568 = vld [vmem:[#allocation6 + $0x8] sm:$0xff]
        %v569 = vld [vmem:[#allocation6 + $0x10] sm:$0xff]
        %v570 = vld [vmem:[#allocation6 + $0x18] sm:$0xff]
        %v571 = vld [vmem:[#allocation6 + $0x20] sm:$0xff]
        %v572 = vld [vmem:[#allocation6 + $0x28] sm:$0xff]
        %v573 = vld [vmem:[#allocation6 + $0x30] sm:$0xff]
        %v574 = vld [vmem:[#allocation6 + $0x38] sm:$0xff]
        %v575 = vld [vmem:[#allocation6 + $0x40] sm:$0xff]
        %v576 = vld [vmem:[#allocation6 + $0x48] sm:$0xff]
        %v577 = vld [vmem:[#allocation6 + $0x50] sm:$0xff]
        %v578 = vld [vmem:[#allocation6 + $0x58] sm:$0xff]
        %v579 = vld [vmem:[#allocation6 + $0x60] sm:$0xff]
        %v580 = vld [vmem:[#allocation6 + $0x68] sm:$0xff]
        %v581 = vld [vmem:[#allocation6 + $0x70] sm:$0xff]
        %v582 = vld [vmem:[#allocation6 + $0x78] sm:$0xff]
        %v584 = vlaneseq
        %v585 = vshrl.u32 %v584, 7
        %v586 = vsub.s32 0, %v585
        %v587 = vrot.slane %v330, %v586
        %589 = vmatprep.subr.mxu0 0.0
        %590 = vmatpush1.msra.mxu0 %v567
        %591 = vmatprep.subr.mxu0 0.0
        %592 = vmatpush1.msra.mxu0 %v568
        %593 = vmatprep.subr.mxu0 0.0
        %594 = vmatpush1.msra.mxu0 %v569
        %595 = vmatprep.subr.mxu0 0.0
        %596 = vmatpush1.msra.mxu0 %v570
        %597 = vmatprep.subr.mxu0 0.0
        %598 = vmatpush1.msra.mxu0 %v571
        %599 = vmatprep.subr.mxu0 0.0
        %600 = vmatpush1.msra.mxu0 %v572
        %601 = vmatprep.subr.mxu0 0.0
        %602 = vmatpush1.msra.mxu0 %v573
        %603 = vmatprep.subr.mxu0 0.0
        %604 = vmatpush1.msra.mxu0 %v574
        %605 = vmatprep.subr.mxu0 0.0
        %606 = vmatpush1.msra.mxu0 %v575
        %607 = vmatprep.subr.mxu0 0.0
        %608 = vmatpush1.msra.mxu0 %v576
        %609 = vmatprep.subr.mxu0 0.0
        %610 = vmatpush1.msra.mxu0 %v577
        %611 = vmatprep.subr.mxu0 0.0
        %612 = vmatpush1.msra.mxu0 %v578
        %613 = vmatprep.subr.mxu0 0.0
        %614 = vmatpush1.msra.mxu0 %v579
        %615 = vmatprep.subr.mxu0 0.0
        %616 = vmatpush1.msra.mxu0 %v580
        %617 = vmatprep.subr.mxu0 0.0
        %618 = vmatpush1.msra.mxu0 %v581
        %619 = vmatprep.subr.mxu0 0.0
        %620 = vmatpush1.msra.mxu0 %v582
        %621 = vmatprep.subr.mxu0 0.0
        %622 = vmatpush1.msra.mxu0 0.0
        %623 = vmatprep.subr.mxu0 0.0
        %624 = vmatpush1.msra.mxu0 0.0
        %625 = vmatprep.subr.mxu0 0.0
        %626 = vmatpush1.msra.mxu0 0.0
        %627 = vmatprep.subr.mxu0 0.0
        %628 = vmatpush1.msra.mxu0 0.0
        %629 = vmatprep.subr.mxu0 0.0
        %630 = vmatpush1.msra.mxu0 0.0
        %631 = vmatprep.subr.mxu0 0.0
        %632 = vmatpush1.msra.mxu0 0.0
        %633 = vmatprep.subr.mxu0 0.0
        %634 = vmatpush1.msra.mxu0 0.0
        %635 = vmatprep.subr.mxu0 0.0
        %636 = vmatpush1.msra.mxu0 0.0
        %637 = vmatprep.subr.mxu0 0.0
        %638 = vmatpush1.msra.mxu0 0.0
        %639 = vmatprep.subr.mxu0 0.0
        %640 = vmatpush1.msra.mxu0 0.0
        %641 = vmatprep.subr.mxu0 0.0
        %642 = vmatpush1.msra.mxu0 0.0
        %643 = vmatprep.subr.mxu0 0.0
        %644 = vmatpush1.msra.mxu0 0.0
        %645 = vmatprep.subr.mxu0 0.0
        %646 = vmatpush1.msra.mxu0 0.0
        %647 = vmatprep.subr.mxu0 0.0
        %648 = vmatpush1.msra.mxu0 0.0
        %649 = vmatprep.subr.mxu0 0.0
        %650 = vmatpush1.msra.mxu0 0.0
        %651 = vmatprep.subr.mxu0 0.0
        %652 = vmatpush1.msra.mxu0 0.0
        %653 = vmatprep.mubr.f32.mxu0 0.0
        %654 = vmatmul.mubr.f32.gmra.mrb[0].mxu0 %v565
        %v655 = vpop.f32.mrb[0].mxu0
        %v656 = vadd.f32 %v587, %v655
        %v657 = vpop.f32.mrb[0].mxu0
        %658 = vmatprep.mubr.f32.mxu0 0.0
        %659 = vmatmul.mubr.f32.gmra.mrb[0].mxu0 %v566
        %v660 = vpop.f32.mrb[0].mxu0
        %v661 = vadd.f32 %v587, %v660
        %v662 = vpop.f32.mrb[0].mxu0
        %663 = vdwg.mxu0
        %v664 = vmul.f32 %v656, 0.5
        %v665 = vmul.f32 %v661, 0.5
        %v666 = vmul.f32 %v656, 0.70710677
        %v667 = vmul.f32 %v661, 0.70710677
        %v668 = verf.f32.pop %v666
        %v669 = verf.f32.pop %v667
        %v670 = vadd.f32 %v668, 1.0
        %v671 = vadd.f32 %v669, 1.0
        %v672 = vmul.f32 %v664, %v670
        %v673 = vmul.f32 %v665, %v671
        %674 = vst [vmem:[%s324] sm:$0xff] %v672
        %675 = vst [vmem:[%s324 + $0x8] sm:$0xff] %v673
        %s676 = smul.u32 2, %s20
        %p677 = scmp.lt.s32.totalorder %s676, 3
        %s678 = scalar_select %p677, %s676, 3
        %s679 = smul.addr %s678, 8
        %s680 = scalar_lea.vmem %s7, %s679
        // Predicated region
        $region61: #{_forward_impl.1} parent=47 // pred_check
          %p681 = pneg %p190
        $region62: #{_forward_impl.1} parent=47 // pred_check_branch
          %683 = sbr.rel (%p681) target = $region64
        $region63: #{_forward_impl.1} parent=47 // pred_region
          %s684 = smul.u32 2, %s20
        $region64: #{_forward_impl.1} parent=47 // pred_fallthru
          _
      $region48: #{_forward_impl.1} parent=5 // pred_fallthru
        _
      %p685 = scmp.le.s32.totalorder 2, %s15
      // Predicated region
      $region65: #{_forward_impl.1} parent=5 // pred_check
        %p686 = pneg %p685
      $region66: #{_forward_impl.1} parent=5 // pred_check_branch
        %688 = sbr.rel (%p686) target = $region68
      $region67: #{_forward_impl.1} parent=5 // pred_region
        %s689 = ssub.s32 %s15, 2
        // Predicated region
        $region69: #{_forward_impl.1} parent=67 // pred_check
          %p690 = pneg %p196
        $region70: #{_forward_impl.1} parent=67 // pred_check_branch
          %692 = sbr.rel (%p690) target = $region72
        $region71: #{_forward_impl.1} parent=67 // pred_region
          %s693 = smul.u32 2, %s21
          %p694 = scmp.lt.s32.totalorder %s693, 3
          %s695 = scalar_select %p694, %s693, 3
          %s696 = smul.addr %s695, 8
          %s697 = scalar_lea.vmem %s7, %s696
        $region72: #{_forward_impl.1} parent=67 // pred_fallthru
          _
      $region68: #{_forward_impl.1} parent=5 // pred_fallthru
        _
    $region6: #{_forward_impl.1} parent=1 // loop_footer
      %s19 = sadd.s32 1, %s15
    $region7: #{_forward_impl.1} parent=1 // loop_footer_branch
      %14 = sbr.rel target = $region3
    $region8: #{_forward_impl.1} parent=1 // loop_exit
      _
    %698 = vsyncpa [#allocation3], 1
    %s699 = scalar_lea.sflag [#allocation3], 1
    %700 = vsyncpa %s699, 1
    %701 = vsyncpa [#allocation5], 1

</llo_original>
